<compile_context>
chip_gen: v7x
topology: tpu7x:2x2x1
jax: 0.10.0
libtpu: 0.0.40
codegen_flags: <defaults>
</compile_context>

<pallas_src>
import functools

import jax
import jax.numpy as jnp
from jax.experimental import pallas as pl
from jax.experimental.pallas import tpu as pltpu


def _yolo_decode_kernel(pred_ref, scale_ref, grid_ref, out_ref, *, attrs):
    """Decode one (bb, R, S) slab of raw YOLO conv outputs.

    pred_ref : VMEM (bb, R, S)  raw conv outputs (input dtype), R = nA*attrs
    scale_ref: VMEM (R, 1) f32  per-row multiplier (stride / anchor_w / anchor_h / 1)
    grid_ref : VMEM (2, S) f32  row 0 = grid_x*stride, row 1 = grid_y*stride
    out_ref  : VMEM (bb, R, S)  decoded outputs (input dtype)
    """
    p = pred_ref[...].astype(jnp.float32)            # (bb, R, S)
    scale = scale_ref[...]                           # (R, 1)
    grid_xy = grid_ref[...]                          # (2, S)
    R = scale.shape[0]

    # Per-row masks from a sublane-only iota: O(R) integer work, not O(R*S).
    row = jax.lax.broadcasted_iota(jnp.int32, (R, 1), 0) % attrs   # (R, 1)
    use_exp = jnp.logical_or(row == 2, row == 3)[None]             # (1, R, 1)
    is_gx = (row == 0)[None]
    is_gy = (row == 1)[None]

    # One exp per element; sigmoid derived from it.  Clamp only the sigmoid
    # branch's input so exp never overflows there (exp rows stay unclamped,
    # matching torch.exp for the w/h channels).
    p_safe = jnp.where(use_exp, p, jnp.minimum(p, 20.0))
    e = jnp.exp(p_safe)
    sig = e / (1.0 + e)
    decoded = jnp.where(use_exp, e, sig)

    # Additive grid offsets only on the x/y rows of each anchor block.
    offset = jnp.where(is_gx, grid_xy[0:1][None],
                       jnp.where(is_gy, grid_xy[1:2][None], 0.0))  # (1, R, S)

    out_ref[...] = (decoded * scale[None] + offset).astype(out_ref.dtype)


def yolo_layer_forward(x, anchors, num_classes, image_dim=416):
    """x: (nB, nA*(5+num_classes), nG, nG) NCHW conv output.
    anchors: (nA, 2) float32 anchor (w, h) in image pixels.
    Returns (nB, nA*nG*nG, 5 + num_classes) like the torch module."""
    nB, C, nG, nG2 = x.shape
    assert nG == nG2
    nA = anchors.shape[0]
    attrs = 5 + num_classes
    assert C == nA * attrs
    stride = float(image_dim) / nG
    S = nG * nG
    R = nA * attrs

    # (nB, C, nG, nG) -> (nB, R, S); no lane padding.
    pred = x.reshape(nB, R, S)
    out_dtype = pred.dtype

    # Tiny hoisted constants.
    anchors = anchors.astype(jnp.float32)
    s_idx = jnp.arange(S, dtype=jnp.int32)
    gx = (s_idx % nG).astype(jnp.float32) * stride           # (S,)
    gy = (s_idx // nG).astype(jnp.float32) * stride           # (S,)
    grid_xy = jnp.stack([gx, gy], axis=0)                     # (2, S)

    scale_rows = jnp.ones((nA, attrs), jnp.float32)
    scale_rows = scale_rows.at[:, 0].set(stride).at[:, 1].set(stride)
    scale_rows = scale_rows.at[:, 2].set(anchors[:, 0])       # exp(w)*anchor_w
    scale_rows = scale_rows.at[:, 3].set(anchors[:, 1])       # exp(h)*anchor_h
    scale = scale_rows.reshape(R, 1)                           # (R, 1)

    # Grid choice: single step for small problems (per-step overhead
    # dominates), otherwise one batch element per "parallel" step.
    itemsize = jnp.dtype(pred.dtype).itemsize
    total_bytes = nB * R * S * itemsize
    bb = nB if total_bytes <= (2 << 20) else 1
    n_steps = pl.cdiv(nB, bb)

    # Raise the scoped-VMEM limit only when the double-buffered blocks need it
    # (large nG / attrs configurations); leave the default otherwise.
    blk_in = bb * R * S * itemsize
    blk_out = bb * R * S * jnp.dtype(out_dtype).itemsize
    need = 2 * (blk_in + blk_out) + (2 << 20)
    vmem_limit = int(min(need, 64 << 20)) if need > (12 << 20) else None

    kernel = functools.partial(_yolo_decode_kernel, attrs=attrs)

    out = pl.pallas_call(
        kernel,
        out_shape=jax.ShapeDtypeStruct((nB, R, S), out_dtype),
        grid=(n_steps,),
        in_specs=[
            pl.BlockSpec((bb, R, S), lambda b: (b, 0, 0)),     # pred
            pl.BlockSpec((R, 1), lambda b: (0, 0)),            # per-row scale
            pl.BlockSpec((2, S), lambda b: (0, 0)),            # grid offsets
        ],
        out_specs=pl.BlockSpec((bb, R, S), lambda b: (b, 0, 0)),
        input_output_aliases={0: 0},
        compiler_params=pltpu.CompilerParams(
            dimension_semantics=("parallel",),
            vmem_limit_bytes=vmem_limit),
    )(pred, scale, grid_xy)

    # Layout-only: (nB, nA*attrs, S) -> (nB, nA*S, attrs).  Left to XLA since
    # attrs-wide (<128) stores from the kernel would be heavily lane-masked.
    out = out.reshape(nB, nA, attrs, S).transpose(0, 1, 3, 2)
    return out.reshape(nB, nA * S, attrs)


def yolo_layer_reference(x, anchors, num_classes, image_dim=416):
    """Plain-JAX transcription of the torch forward (targets=None)."""
    nB, C, nG, _ = x.shape
    nA = anchors.shape[0]
    attrs = 5 + num_classes
    stride = image_dim / nG
    pred = x.reshape(nB, nA, attrs, nG, nG).transpose(0, 1, 3, 4, 2)
    sx = jax.nn.sigmoid(pred[..., 0])
    sy = jax.nn.sigmoid(pred[..., 1])
    w = pred[..., 2]
    h = pred[..., 3]
    conf = jax.nn.sigmoid(pred[..., 4])
    cls = jax.nn.sigmoid(pred[..., 5:])
    grid_x = jnp.arange(nG, dtype=jnp.float32).reshape(1, 1, 1, nG)
    grid_y = jnp.arange(nG, dtype=jnp.float32).reshape(1, 1, nG, 1)
    scaled = anchors / stride
    aw = scaled[:, 0].reshape(1, nA, 1, 1)
    ah = scaled[:, 1].reshape(1, nA, 1, 1)
    boxes = jnp.stack(
        [sx + grid_x, sy + grid_y, jnp.exp(w) * aw, jnp.exp(h) * ah], axis=-1)
    return jnp.concatenate(
        [boxes.reshape(nB, -1, 4) * stride,
         conf.reshape(nB, -1, 1),
         cls.reshape(nB, -1, num_classes)], axis=-1)


if __name__ == "__main__":
    key = jax.random.PRNGKey(0)

    # deterministic "config": 3 anchors selected by anchor_mask, 3 classes
    num_classes = 3
    anchor_mask = [0, 1, 2]
    flat_anchors = [10.0, 13.0, 16.0, 30.0, 33.0, 23.0]
    pairs = [(flat_anchors[i], flat_anchors[i + 1])
             for i in range(0, len(flat_anchors), 2)]
    anchors = jnp.array([pairs[i] for i in anchor_mask], dtype=jnp.float32)

    nA = anchors.shape[0]
    nB, nG = 2, 16
    C = nA * (5 + num_classes)               # 24
    x = jax.random.normal(key, (nB, C, nG, nG), dtype=jnp.float32)

    fwd = jax.jit(functools.partial(yolo_layer_forward, num_classes=num_classes))
    out = jax.block_until_ready(fwd(x, anchors))

    ref = yolo_layer_reference(x, anchors, num_classes)
    assert out.shape == (nB, nA * nG * nG, 5 + num_classes), out.shape
    assert jnp.allclose(out, ref, atol=1e-4, rtol=1e-4), "mismatch vs reference"

    print("KERNEL_OK")
</pallas_src>

<mosaic_0001>
module attributes {stable_mosaic.version = 11 : i64} {
  func.func @_yolo_decode_kernel(%arg0: i32, %arg1: memref<2x24x256xf32, #tpu.memory_space<vmem>>, %arg2: memref<24x1xf32, #tpu.memory_space<vmem>>, %arg3: memref<2x256xf32, #tpu.memory_space<vmem>>, %arg4: memref<2x24x256xf32, #tpu.memory_space<vmem>>) attributes {dimension_semantics = [#tpu.dimension_semantics<parallel>], iteration_bounds = array<i64: 1>, scalar_prefetch = 0 : i64, scratch_operands = 0 : i64, tpu.core_type = #tpu.core_type<tc>, window_params = [{transform_indices = @transform_0, window_bounds = array<i64: 2, 24, 256>}, {pipeline_mode = #tpu.pipeline_mode<synchronous>, transform_indices = @transform_1, window_bounds = array<i64: 24, 1>}, {pipeline_mode = #tpu.pipeline_mode<synchronous>, transform_indices = @transform_2, window_bounds = array<i64: 2, 256>}, {transform_indices = @transform_3, window_bounds = array<i64: 2, 24, 256>}]} {
    %c0 = arith.constant 0 : index
    %c0_0 = arith.constant 0 : index
    %c0_1 = arith.constant 0 : index
    %0 = vector.load %arg1[%c0, %c0_0, %c0_1] : memref<2x24x256xf32, #tpu.memory_space<vmem>>, vector<2x24x256xf32>
    %c0_2 = arith.constant 0 : index
    %c0_3 = arith.constant 0 : index
    %1 = vector.load %arg2[%c0_2, %c0_3] : memref<24x1xf32, #tpu.memory_space<vmem>>, vector<24x1xf32>
    %c0_4 = arith.constant 0 : index
    %c0_5 = arith.constant 0 : index
    %2 = vector.load %arg3[%c0_4, %c0_5] : memref<2x256xf32, #tpu.memory_space<vmem>>, vector<2x256xf32>
    %3 = tpu.iota {dimensions = array<i32: 0>} : vector<24x1xi32>
    %c8_i32 = arith.constant 8 : i32
    %c0_i32 = arith.constant 0 : i32
    %4 = arith.cmpi eq, %c8_i32, %c0_i32 : i32
    %c1_i32 = arith.constant 1 : i32
    %5 = arith.select %4, %c1_i32, %c8_i32 : i32
    %6 = vector.broadcast %5 : i32 to vector<24x1xi32>
    %7 = arith.remsi %3, %6 : vector<24x1xi32>
    %c0_i32_6 = arith.constant 0 : i32
    %8 = vector.broadcast %c0_i32_6 : i32 to vector<24x1xi32>
    %9 = arith.cmpi ne, %7, %8 : vector<24x1xi32>
    %c0_i32_7 = arith.constant 0 : i32
    %10 = vector.broadcast %c0_i32_7 : i32 to vector<24x1xi32>
    %11 = arith.cmpi slt, %7, %10 : vector<24x1xi32>
    %c0_i32_8 = arith.constant 0 : i32
    %12 = arith.cmpi slt, %5, %c0_i32_8 : i32
    %13 = vector.broadcast %12 : i1 to vector<24x1xi1>
    %14 = vector.broadcast %13 : vector<24x1xi1> to vector<24x1xi1>
    %15 = arith.xori %11, %14 : vector<24x1xi1>
    %16 = arith.andi %15, %9 : vector<24x1xi1>
    %17 = vector.broadcast %5 : i32 to vector<24x1xi32>
    %18 = arith.addi %7, %17 : vector<24x1xi32>
    %19 = arith.select %16, %18, %7 : vector<24x1xi1>, vector<24x1xi32>
    %c2_i32 = arith.constant 2 : i32
    %20 = vector.broadcast %c2_i32 : i32 to vector<24x1xi32>
    %21 = arith.cmpi eq, %19, %20 : vector<24x1xi32>
    %c3_i32 = arith.constant 3 : i32
    %22 = vector.broadcast %c3_i32 : i32 to vector<24x1xi32>
    %23 = arith.cmpi eq, %19, %22 : vector<24x1xi32>
    %24 = arith.ori %21, %23 : vector<24x1xi1>
    %25 = vector.shape_cast %24 : vector<24x1xi1> to vector<1x24x1xi1>
    %c0_i32_9 = arith.constant 0 : i32
    %26 = vector.broadcast %c0_i32_9 : i32 to vector<24x1xi32>
    %27 = arith.cmpi eq, %19, %26 : vector<24x1xi32>
    %28 = vector.shape_cast %27 : vector<24x1xi1> to vector<1x24x1xi1>
    %c1_i32_10 = arith.constant 1 : i32
    %29 = vector.broadcast %c1_i32_10 : i32 to vector<24x1xi32>
    %30 = arith.cmpi eq, %19, %29 : vector<24x1xi32>
    %31 = vector.shape_cast %30 : vector<24x1xi1> to vector<1x24x1xi1>
    %cst = arith.constant 2.000000e+01 : f32
    %32 = vector.broadcast %cst : f32 to vector<2x24x256xf32>
    %33 = arith.minimumf %0, %32 : vector<2x24x256xf32>
    %34 = vector.shape_cast %25 : vector<1x24x1xi1> to vector<1x24x1xi1>
    %35 = vector.broadcast %34 : vector<1x24x1xi1> to vector<2x24x256xi1>
    %36 = arith.select %35, %0, %33 : vector<2x24x256xi1>, vector<2x24x256xf32>
    %37 = math.exp %36 : vector<2x24x256xf32>
    %cst_11 = arith.constant 1.000000e+00 : f32
    %38 = vector.broadcast %cst_11 : f32 to vector<2x24x256xf32>
    %39 = arith.addf %38, %37 : vector<2x24x256xf32>
    %40 = arith.divf %37, %39 : vector<2x24x256xf32>
    %41 = vector.shape_cast %25 : vector<1x24x1xi1> to vector<1x24x1xi1>
    %42 = vector.broadcast %41 : vector<1x24x1xi1> to vector<2x24x256xi1>
    %43 = arith.select %42, %37, %40 : vector<2x24x256xi1>, vector<2x24x256xf32>
    %44 = vector.extract_strided_slice %2 {offsets = [0, 0], sizes = [1, 256], strides = [1, 1]} : vector<2x256xf32> to vector<1x256xf32>
    %45 = vector.shape_cast %44 : vector<1x256xf32> to vector<1x1x256xf32>
    %46 = vector.extract_strided_slice %2 {offsets = [1, 0], sizes = [1, 256], strides = [1, 1]} : vector<2x256xf32> to vector<1x256xf32>
    %47 = vector.shape_cast %46 : vector<1x256xf32> to vector<1x1x256xf32>
    %cst_12 = arith.constant 0.000000e+00 : f32
    %48 = vector.shape_cast %31 : vector<1x24x1xi1> to vector<1x24x1xi1>
    %49 = vector.broadcast %48 : vector<1x24x1xi1> to vector<1x24x256xi1>
    %50 = vector.shape_cast %47 : vector<1x1x256xf32> to vector<1x1x256xf32>
    %51 = vector.broadcast %50 : vector<1x1x256xf32> to vector<1x24x256xf32>
    %52 = vector.broadcast %cst_12 : f32 to vector<1x24x256xf32>
    %53 = arith.select %49, %51, %52 : vector<1x24x256xi1>, vector<1x24x256xf32>
    %54 = vector.shape_cast %28 : vector<1x24x1xi1> to vector<1x24x1xi1>
    %55 = vector.broadcast %54 : vector<1x24x1xi1> to vector<1x24x256xi1>
    %56 = vector.shape_cast %45 : vector<1x1x256xf32> to vector<1x1x256xf32>
    %57 = vector.broadcast %56 : vector<1x1x256xf32> to vector<1x24x256xf32>
    %58 = arith.select %55, %57, %53 : vector<1x24x256xi1>, vector<1x24x256xf32>
    %59 = vector.shape_cast %1 : vector<24x1xf32> to vector<1x24x1xf32>
    %60 = vector.broadcast %59 : vector<1x24x1xf32> to vector<2x24x256xf32>
    %61 = arith.mulf %43, %60 : vector<2x24x256xf32>
    %62 = vector.broadcast %58 : vector<1x24x256xf32> to vector<2x24x256xf32>
    %63 = arith.addf %61, %62 : vector<2x24x256xf32>
    %c0_13 = arith.constant 0 : index
    %c0_14 = arith.constant 0 : index
    %c0_15 = arith.constant 0 : index
    %64 = vector.load %arg4[%c0_13, %c0_14, %c0_15] : memref<2x24x256xf32, #tpu.memory_space<vmem>>, vector<2x24x256xf32>
    tpu.vector_store %arg4[%c0_13, %c0_14, %c0_15], %63 {strides = array<i32>} : memref<2x24x256xf32, #tpu.memory_space<vmem>>, vector<2x24x256xf32>,
    return
  }
  func.func @transform_0(%arg0: i32) -> (i32, i32, i32) {
    %c0_i32 = arith.constant 0 : i32
    %c0_i32_0 = arith.constant 0 : i32
    %c0_i32_1 = arith.constant 0 : i32
    return %arg0, %c0_i32, %c0_i32_0 : i32, i32, i32
  }
  func.func @transform_1(%arg0: i32) -> (i32, i32) {
    %c0_i32 = arith.constant 0 : i32
    %c0_i32_0 = arith.constant 0 : i32
    %c0_i32_1 = arith.constant 0 : i32
    return %c0_i32, %c0_i32_0 : i32, i32
  }
  func.func @transform_2(%arg0: i32) -> (i32, i32) {
    %c0_i32 = arith.constant 0 : i32
    %c0_i32_0 = arith.constant 0 : i32
    %c0_i32_1 = arith.constant 0 : i32
    return %c0_i32, %c0_i32_0 : i32, i32
  }
  func.func @transform_3(%arg0: i32) -> (i32, i32, i32) {
    %c0_i32 = arith.constant 0 : i32
    %c0_i32_0 = arith.constant 0 : i32
    %c0_i32_1 = arith.constant 0 : i32
    return %arg0, %c0_i32, %c0_i32_0 : i32, i32, i32
  }
}

</mosaic_0001>

<llo_original>
// kernel: yolo_layer_forward.1
$region0: #{yolo_layer_forward.1}
  #allocation0 [shape = 'u32[]', space=smem, size = 0x4, offset = 0x4, fixed_abs, tag = 'smem constant byte address 0x4 - core index']
  #allocation1 [shape = 'u32[144,128]{1,0:T(1,128)}', space=vmem, size = 0x12000, scoped, tag = 'internal scratch']
  %s0 = inlined_call_operand.vmem [shape: f32[2,24,256], index: 0, kind: input, shape index: {}, may-alias: {0,3}]
  %s1 = inlined_call_operand.vmem [shape: f32[24,1], index: 1, kind: input, shape index: {}]
  %s2 = inlined_call_operand.vmem [shape: f32[2,256], index: 2, kind: input, shape index: {}]
  %s3 = inlined_call_operand.vmem [shape: f32[2,24,256], index: 3, kind: output, shape index: {}, may-alias: {0,3}]
  %s4 = sld [smem:[#allocation0]]
  $region22: #{yolo_layer_forward.1} parent=0
    _
  %s6 = ssub.s32 1, %s4
  %s7 = scalar_select 0, %s6, %s4
  // Predicated region
  $region2: #{yolo_layer_forward.1} parent=0 // pred_check
    _
  $region3: #{yolo_layer_forward.1} parent=0 // pred_check_branch
    %9 = sbr.rel (0) target = $region5
  $region4: #{yolo_layer_forward.1} parent=0 // pred_region
    _
  $region5: #{yolo_layer_forward.1} parent=0 // pred_fallthru
    _
  // Predicated region
  $region6: #{yolo_layer_forward.1} parent=0 // pred_check
    _
  $region7: #{yolo_layer_forward.1} parent=0 // pred_check_branch
    %11 = sbr.rel (0) target = $region9
  $region8: #{yolo_layer_forward.1} parent=0 // pred_region
    _
  $region9: #{yolo_layer_forward.1} parent=0 // pred_fallthru
    _
  // Predicated region
  $region10: #{yolo_layer_forward.1} parent=0 // pred_check
    _
  $region11: #{yolo_layer_forward.1} parent=0 // pred_check_branch
    %13 = sbr.rel (0) target = $region13
  $region12: #{yolo_layer_forward.1} parent=0 // pred_region
    _
  $region13: #{yolo_layer_forward.1} parent=0 // pred_fallthru
    _
  %v14 = vld [vmem:[%s0] sm:$0xff]
  %v15 = vld [vmem:[%s0 + $0x8] sm:$0xff]
  %v16 = vld [vmem:[%s0 + $0x10] sm:$0xff]
  %v17 = vld [vmem:[%s0 + $0x18] sm:$0xff]
  %v18 = vld [vmem:[%s0 + $0x20] sm:$0xff]
  %v19 = vld [vmem:[%s0 + $0x28] sm:$0xff]
  %v20 = vld [vmem:[%s0 + $0x30] sm:$0xff]
  %v21 = vld [vmem:[%s0 + $0x38] sm:$0xff]
  %v22 = vld [vmem:[%s0 + $0x40] sm:$0xff]
  %v23 = vld [vmem:[%s0 + $0x48] sm:$0xff]
  %v24 = vld [vmem:[%s0 + $0x50] sm:$0xff]
  %v25 = vld [vmem:[%s0 + $0x58] sm:$0xff]
  %v26 = vld [vmem:[%s1] sm:$0xff]
  %v27 = vld [vmem:[%s1 + $0x8] sm:$0xff]
  %v28 = vld [vmem:[%s1 + $0x10] sm:$0xff]
  %v29 = vld [vmem:[%s2] sm:$0xf]
  %v30 = vlaneseq
  %v31 = vshrl.u32 %v30, 7
  %v32 = vadd.s32 %v31, 8
  %v33 = vadd.s32 %v31, 16
  %vm34 = vcmp.lt.s32.totalorder %v31, 0
  %v35 = vsub.s32 0, %v31
  %v36 = vsel %vm34, %v35, %v31
  %v37 = vshrl.u32 %v36, 3
  %v38 = vand.u32 %v36, 7
  %v39 = vsub.s32 0, %v38
  %v40 = vsel %vm34, %v39, %v38
  %vm41 = vcmp.lt.s32.totalorder %v32, 0
  %v42 = vsub.s32 0, %v32
  %v43 = vsel %vm41, %v42, %v32
  %v44 = vshrl.u32 %v43, 3
  %v45 = vand.u32 %v43, 7
  %v46 = vsub.s32 0, %v45
  %v47 = vsel %vm41, %v46, %v45
  %vm48 = vcmp.lt.s32.totalorder %v33, 0
  %v49 = vsub.s32 0, %v33
  %v50 = vsel %vm48, %v49, %v33
  %v51 = vshrl.u32 %v50, 3
  %v52 = vand.u32 %v50, 7
  %v53 = vsub.s32 0, %v52
  %v54 = vsel %vm48, %v53, %v52
  %vm55 = vcmp.ne.s32.totalorder %v40, 0
  %vm56 = vcmp.ne.s32.totalorder %v47, 0
  %vm57 = vcmp.ne.s32.totalorder %v54, 0
  %vm58 = vcmp.lt.s32.totalorder %v40, 0
  %vm59 = vcmp.lt.s32.totalorder %v47, 0
  %vm60 = vcmp.lt.s32.totalorder %v54, 0
  %vm61 = vmand %vm58, %vm55
  %vm62 = vmand %vm59, %vm56
  %vm63 = vmand %vm60, %vm57
  %v64 = vadd.s32 %v40, 8
  %v65 = vadd.s32 %v47, 8
  %v66 = vadd.s32 %v54, 8
  %v67 = vsel %vm61, %v64, %v40
  %v68 = vsel %vm62, %v65, %v47
  %v69 = vsel %vm63, %v66, %v54
  %vm70 = vcmp.eq.s32.totalorder %v67, 2
  %vm71 = vcmp.eq.s32.totalorder %v68, 2
  %vm72 = vcmp.eq.s32.totalorder %v69, 2
  %vm73 = vcmp.eq.s32.totalorder %v67, 3
  %vm74 = vcmp.eq.s32.totalorder %v68, 3
  %vm75 = vcmp.eq.s32.totalorder %v69, 3
  %vm76 = vmor %vm70, %vm73
  %vm77 = vmor %vm71, %vm74
  %vm78 = vmor %vm72, %vm75
  %vm79 = vcmp.eq.s32.totalorder %v67, 0
  %vm80 = vcmp.eq.s32.totalorder %v68, 0
  %vm81 = vcmp.eq.s32.totalorder %v69, 0
  %vm82 = vcmp.eq.s32.totalorder %v67, 1
  %vm83 = vcmp.eq.s32.totalorder %v68, 1
  %vm84 = vcmp.eq.s32.totalorder %v69, 1
  %v85 = vmin.f32 %v14, 20.0
  %v86 = vmin.f32 %v15, 20.0
  %v87 = vmin.f32 %v16, 20.0
  %v88 = vmin.f32 %v17, 20.0
  %v89 = vmin.f32 %v18, 20.0
  %v90 = vmin.f32 %v19, 20.0
  %v91 = vmin.f32 %v20, 20.0
  %v92 = vmin.f32 %v21, 20.0
  %v93 = vmin.f32 %v22, 20.0
  %v94 = vmin.f32 %v23, 20.0
  %v95 = vmin.f32 %v24, 20.0
  %v96 = vmin.f32 %v25, 20.0
  %v97 = vsel %vm76, 1, 0
  %v98 = vsel %vm77, 1, 0
  %v99 = vsel %vm78, 1, 0
  %vm100 = vcmp.eq.s32.totalorder %v97, 1
  %vm101 = vcmp.eq.s32.totalorder %v98, 1
  %vm102 = vcmp.eq.s32.totalorder %v99, 1
  %v103 = vsel %vm100, %v14, %v85
  %v104 = vsel %vm100, %v15, %v86
  %v105 = vsel %vm101, %v16, %v87
  %v106 = vsel %vm101, %v17, %v88
  %v107 = vsel %vm102, %v18, %v89
  %v108 = vsel %vm102, %v19, %v90
  %v109 = vsel %vm100, %v20, %v91
  %v110 = vsel %vm100, %v21, %v92
  %v111 = vsel %vm101, %v22, %v93
  %v112 = vsel %vm101, %v23, %v94
  %v113 = vsel %vm102, %v24, %v95
  %v114 = vsel %vm102, %v25, %v96
  %v115 = vmul.f32 %v103, 1.442695
  %v116 = vpow.pop %v115
  %v117 = vmul.f32 %v104, 1.442695
  %v118 = vpow.pop %v117
  %v119 = vmul.f32 %v105, 1.442695
  %v120 = vpow.pop %v119
  %v121 = vmul.f32 %v106, 1.442695
  %v122 = vpow.pop %v121
  %v123 = vmul.f32 %v107, 1.442695
  %v124 = vpow.pop %v123
  %v125 = vmul.f32 %v108, 1.442695
  %v126 = vpow.pop %v125
  %v127 = vmul.f32 %v109, 1.442695
  %v128 = vpow.pop %v127
  %v129 = vmul.f32 %v110, 1.442695
  %v130 = vpow.pop %v129
  %v131 = vmul.f32 %v111, 1.442695
  %v132 = vpow.pop %v131
  %v133 = vmul.f32 %v112, 1.442695
  %v134 = vpow.pop %v133
  %v135 = vmul.f32 %v113, 1.442695
  %v136 = vpow.pop %v135
  %v137 = vmul.f32 %v114, 1.442695
  %v138 = vpow.pop %v137
  %v139 = vadd.f32 %v116, 1.0
  %v140 = vadd.f32 %v118, 1.0
  %v141 = vadd.f32 %v120, 1.0
  %v142 = vadd.f32 %v122, 1.0
  %v143 = vadd.f32 %v124, 1.0
  %v144 = vadd.f32 %v126, 1.0
  %v145 = vadd.f32 %v128, 1.0
  %v146 = vadd.f32 %v130, 1.0
  %v147 = vadd.f32 %v132, 1.0
  %v148 = vadd.f32 %v134, 1.0
  %v149 = vadd.f32 %v136, 1.0
  %v150 = vadd.f32 %v138, 1.0
  %v151 = vrcp.pop %v139
  %v152 = vmul.f32 %v116, %v151
  %v153 = vrcp.pop %v140
  %v154 = vmul.f32 %v118, %v153
  %v155 = vrcp.pop %v141
  %v156 = vmul.f32 %v120, %v155
  %v157 = vrcp.pop %v142
  %v158 = vmul.f32 %v122, %v157
  %v159 = vrcp.pop %v143
  %v160 = vmul.f32 %v124, %v159
  %v161 = vrcp.pop %v144
  %v162 = vmul.f32 %v126, %v161
  %v163 = vrcp.pop %v145
  %v164 = vmul.f32 %v128, %v163
  %v165 = vrcp.pop %v146
  %v166 = vmul.f32 %v130, %v165
  %v167 = vrcp.pop %v147
  %v168 = vmul.f32 %v132, %v167
  %v169 = vrcp.pop %v148
  %v170 = vmul.f32 %v134, %v169
  %v171 = vrcp.pop %v149
  %v172 = vmul.f32 %v136, %v171
  %v173 = vrcp.pop %v150
  %v174 = vmul.f32 %v138, %v173
  %v175 = vsel %vm100, %v116, %v152
  %v176 = vsel %vm100, %v118, %v154
  %v177 = vsel %vm101, %v120, %v156
  %v178 = vsel %vm101, %v122, %v158
  %v179 = vsel %vm102, %v124, %v160
  %v180 = vsel %vm102, %v126, %v162
  %v181 = vsel %vm100, %v128, %v164
  %v182 = vsel %vm100, %v130, %v166
  %v183 = vsel %vm101, %v132, %v168
  %v184 = vsel %vm101, %v134, %v170
  %v185 = vsel %vm102, %v136, %v172
  %v186 = vsel %vm102, %v138, %v174
  %v187 = vsel %vm82, 1, 0
  %v188 = vsel %vm83, 1, 0
  %v189 = vsel %vm84, 1, 0
  %vm190 = vcmp.eq.s32.totalorder %v187, 1
  %vm191 = vcmp.eq.s32.totalorder %v188, 1
  %vm192 = vcmp.eq.s32.totalorder %v189, 1
  %v194 = vlaneseq
  %v195 = vshrl.u32 %v194, 7
  %v196 = vsub.s32 1, %v195
  %v197 = vrot.slane %v29, %v196
  %v198 = vlaneseq
  %v199 = vshrl.u32 %v198, 7
  %v200 = vsub.s32 3, %v199
  %v201 = vrot.slane %v29, %v200
  %v204 = vlaneseq
  %v205 = vshrl.u32 %v204, 7
  %v206 = vsub.s32 1, %v205
  %v207 = vrot.slane %v197, %v206
  %v208 = vlaneseq
  %v209 = vshrl.u32 %v208, 7
  %v210 = vsub.s32 1, %v209
  %v211 = vrot.slane %v201, %v210
  %v212 = vsel %vm190, %v207, 0.0
  %v213 = vsel %vm190, %v211, 0.0
  %v214 = vsel %vm191, %v207, 0.0
  %v215 = vsel %vm191, %v211, 0.0
  %v216 = vsel %vm192, %v207, 0.0
  %v217 = vsel %vm192, %v211, 0.0
  %v218 = vsel %vm79, 1, 0
  %v219 = vsel %vm80, 1, 0
  %v220 = vsel %vm81, 1, 0
  %vm221 = vcmp.eq.s32.totalorder %v218, 1
  %vm222 = vcmp.eq.s32.totalorder %v219, 1
  %vm223 = vcmp.eq.s32.totalorder %v220, 1
  %v224 = vlaneseq
  %v225 = vshrl.u32 %v224, 7
  %v226 = vsub.s32 0, %v225
  %v227 = vrot.slane %v29, %v226
  %v228 = vlaneseq
  %v229 = vshrl.u32 %v228, 7
  %v230 = vsub.s32 2, %v229
  %v231 = vrot.slane %v29, %v230
  %v234 = vlaneseq
  %v235 = vshrl.u32 %v234, 7
  %v236 = vsub.s32 0, %v235
  %v237 = vrot.slane %v227, %v236
  %v238 = vlaneseq
  %v239 = vshrl.u32 %v238, 7
  %v240 = vsub.s32 0, %v239
  %v241 = vrot.slane %v231, %v240
  %v242 = vsel %vm221, %v237, %v212
  %v243 = vsel %vm221, %v241, %v213
  %v244 = vsel %vm222, %v237, %v214
  %v245 = vsel %vm222, %v241, %v215
  %v246 = vsel %vm223, %v237, %v216
  %v247 = vsel %vm223, %v241, %v217
  %249 = vset.pattern.permute.xlu0 0
  %250 = vperm.xlu0 %249, %v26
  %v251 = vpop.permute.xlu0 %250
  %254 = vset.pattern.permute.xlu0 0
  %255 = vperm.xlu0 %254, %v27
  %v256 = vpop.permute.xlu0 %255
  %259 = vset.pattern.permute.xlu0 0
  %260 = vperm.xlu0 %259, %v28
  %v261 = vpop.permute.xlu0 %260
  %v263 = vmul.f32 %v175, %v251
  %v264 = vmul.f32 %v176, %v251
  %v265 = vmul.f32 %v177, %v256
  %v266 = vmul.f32 %v178, %v256
  %v267 = vmul.f32 %v179, %v261
  %v268 = vmul.f32 %v180, %v261
  %v269 = vmul.f32 %v181, %v251
  %v270 = vmul.f32 %v182, %v251
  %v271 = vmul.f32 %v183, %v256
  %v272 = vmul.f32 %v184, %v256
  %v273 = vmul.f32 %v185, %v261
  %v274 = vmul.f32 %v186, %v261
  %v275 = vadd.f32 %v263, %v242
  %v276 = vadd.f32 %v264, %v243
  %v277 = vadd.f32 %v265, %v244
  %v278 = vadd.f32 %v266, %v245
  %v279 = vadd.f32 %v267, %v246
  %v280 = vadd.f32 %v268, %v247
  %v281 = vadd.f32 %v269, %v242
  %v282 = vadd.f32 %v270, %v243
  %v283 = vadd.f32 %v271, %v244
  %v284 = vadd.f32 %v272, %v245
  %v285 = vadd.f32 %v273, %v246
  %v286 = vadd.f32 %v274, %v247
  %287 = vst [vmem:[%s3] sm:$0xff] %v275
  %288 = vst [vmem:[%s3 + $0x8] sm:$0xff] %v276
  %289 = vst [vmem:[%s3 + $0x10] sm:$0xff] %v277
  %290 = vst [vmem:[%s3 + $0x18] sm:$0xff] %v278
  %291 = vst [vmem:[%s3 + $0x20] sm:$0xff] %v279
  %292 = vst [vmem:[%s3 + $0x28] sm:$0xff] %v280
  %293 = vst [vmem:[%s3 + $0x30] sm:$0xff] %v281
  %294 = vst [vmem:[%s3 + $0x38] sm:$0xff] %v282
  %295 = vst [vmem:[%s3 + $0x40] sm:$0xff] %v283
  %296 = vst [vmem:[%s3 + $0x48] sm:$0xff] %v284
  %297 = vst [vmem:[%s3 + $0x50] sm:$0xff] %v285
  %298 = vst [vmem:[%s3 + $0x58] sm:$0xff] %v286
  // Predicated region
  $region14: #{yolo_layer_forward.1} parent=0 // pred_check
    _
  $region15: #{yolo_layer_forward.1} parent=0 // pred_check_branch
    %300 = sbr.rel (0) target = $region17
  $region16: #{yolo_layer_forward.1} parent=0 // pred_region
    _
  $region17: #{yolo_layer_forward.1} parent=0 // pred_fallthru
    _
  // Predicated region
  $region18: #{yolo_layer_forward.1} parent=0 // pred_check
    _
  $region19: #{yolo_layer_forward.1} parent=0 // pred_check_branch
    %302 = sbr.rel (0) target = $region21
  $region20: #{yolo_layer_forward.1} parent=0 // pred_region
    _
  $region21: #{yolo_layer_forward.1} parent=0 // pred_fallthru
    _

</llo_original>
